<compile_context>
chip_gen: v7x
topology: tpu7x:2x2x1
jax: 0.10.0
libtpu: 0.0.40
codegen_flags: <defaults>
</compile_context>

<pallas_src>
import functools

import jax
import jax.numpy as jnp
from jax.experimental import pallas as pl
from jax.experimental.pallas import tpu as pltpu

_LANE = 128
_SUBLANE = 8


def _round_up(x, m):
    return (x + m - 1) // m * m


def _mlp_kernel(x_ref, wfc_ref, wproj_ref, o_ref, acc_ref):
    # x_ref:     (bm, Dp)        token tile (compute dtype)
    # wfc_ref:   (Dp, bk)        slice of c_fc.weight.T along the hidden dim
    # wproj_ref: (bk, Dp)        matching slice of c_proj.weight.T
    # o_ref:     (bm, Dp)        output tile
    # acc_ref:   (bm, Dp) f32    VMEM accumulator across the hidden-dim grid axis
    k = pl.program_id(1)

    @pl.when(k == 0)
    def _():
        acc_ref[...] = jnp.zeros_like(acc_ref)

    # First matmul reduces over the full (padded) embedding dim D.
    h = jnp.dot(x_ref[...], wfc_ref[...], preferred_element_type=jnp.float32)
    # relu(.)^2 in f32 to avoid squaring-induced precision loss.
    h = jnp.maximum(h, 0.0)
    h = h * h
    # Second matmul: partial reduction over this hidden slice, f32 accumulation.
    acc_ref[...] += jnp.dot(h.astype(wproj_ref.dtype), wproj_ref[...],
                            preferred_element_type=jnp.float32)

    @pl.when(k == pl.num_programs(1) - 1)
    def _():
        o_ref[...] = acc_ref[...].astype(o_ref.dtype)


@functools.partial(jax.jit, static_argnames=("block_m", "block_k", "compute_dtype"))
def mlp_forward(x, w_fc_t, w_proj_t, block_m=256, block_k=1024,
                compute_dtype=jnp.bfloat16):
    """GPT MLP forward.

    x:        (..., D)   activations
    w_fc_t:   (D, 4D)    == c_fc.weight.T
    w_proj_t: (4D, D)    == c_proj.weight.T
    """
    orig_shape = x.shape
    out_dtype = x.dtype
    d = orig_shape[-1]
    hidden = w_fc_t.shape[1]

    x2d = x.reshape(-1, d)
    m = x2d.shape[0]

    # Lane-dense / MXU-aligned (padded) dimensions and tile sizes.
    d_pad = _round_up(d, _LANE)
    bm = _round_up(min(block_m, _round_up(m, _SUBLANE)), _SUBLANE)
    bk = _round_up(min(block_k, _round_up(hidden, _LANE)), _LANE)
    m_pad = _round_up(m, bm)
    h_pad = _round_up(hidden, bk)

    # Cast to the compute dtype (bf16 by default); accumulation stays f32.
    xc = x2d.astype(compute_dtype)
    wfc = w_fc_t.astype(compute_dtype)
    wpj = w_proj_t.astype(compute_dtype)

    # Zero-padding is semantically inert: padded D/hidden columns contribute 0.
    if (m_pad, d_pad) != (m, d):
        xc = jnp.pad(xc, ((0, m_pad - m), (0, d_pad - d)))
    if (d_pad, h_pad) != (d, hidden):
        wfc = jnp.pad(wfc, ((0, d_pad - d), (0, h_pad - hidden)))
        wpj = jnp.pad(wpj, ((0, h_pad - hidden), (0, d_pad - d)))

    grid = (m_pad // bm, h_pad // bk)

    comp_bytes = jnp.dtype(compute_dtype).itemsize
    out_bytes = jnp.dtype(out_dtype).itemsize
    cost = pl.CostEstimate(
        flops=4 * m_pad * d_pad * h_pad,  # two matmuls, 2*M*D*H each
        transcendentals=0,
        bytes_accessed=(m_pad * d_pad + 2 * d_pad * h_pad) * comp_bytes
        + m_pad * d_pad * out_bytes,
    )

    out = pl.pallas_call(
        _mlp_kernel,
        out_shape=jax.ShapeDtypeStruct((m_pad, d_pad), out_dtype),
        grid_spec=pltpu.PrefetchScalarGridSpec(
            num_scalar_prefetch=0,
            grid=grid,
            in_specs=[
                pl.BlockSpec((bm, d_pad), lambda i, k: (i, 0)),
                pl.BlockSpec((d_pad, bk), lambda i, k: (0, k)),
                pl.BlockSpec((bk, d_pad), lambda i, k: (k, 0)),
            ],
            out_specs=pl.BlockSpec((bm, d_pad), lambda i, k: (i, 0)),
            scratch_shapes=[pltpu.VMEM((bm, d_pad), jnp.float32)],
        ),
        compiler_params=pltpu.CompilerParams(
            dimension_semantics=("parallel", "arbitrary"),
            vmem_limit_bytes=56 * 1024 * 1024,
        ),
        cost_estimate=cost,
    )(xc, wfc, wpj)

    return out[:m, :d].reshape(orig_shape)


def _reference(x, w_fc_t, w_proj_t, compute_dtype=jnp.float32):
    """Pure-JAX reference mirroring the kernel's precision choices."""
    shape = x.shape
    xc = x.reshape(-1, shape[-1]).astype(compute_dtype)
    h = jnp.dot(xc, w_fc_t.astype(compute_dtype),
                preferred_element_type=jnp.float32)
    h = jnp.square(jnp.maximum(h, 0.0))
    y = jnp.dot(h.astype(compute_dtype), w_proj_t.astype(compute_dtype),
                preferred_element_type=jnp.float32)
    return y.astype(x.dtype).reshape(shape)


if __name__ == "__main__":
    # Small config consistent with the module: n_embd=32 -> hidden=128.
    batch, seq, n_embd = 2, 8, 32
    hidden = 4 * n_embd

    key = jax.random.PRNGKey(0)
    kx, kfc, kchk = jax.random.split(key, 3)

    x = jax.random.normal(kx, (batch, seq, n_embd), dtype=jnp.float32)

    # c_fc: PyTorch nn.Linear default init ~ U(-1/sqrt(in), 1/sqrt(in)),
    # weight shape (4D, D); we store its transpose (D, 4D).
    bound = 1.0 / (n_embd ** 0.5)
    w_fc_t = jax.random.uniform(kfc, (n_embd, hidden), dtype=jnp.float32,
                                minval=-bound, maxval=bound)
    # c_proj.weight.data.zero_() in __init__ -> zeros; transpose is (4D, D).
    w_proj_t = jnp.zeros((hidden, n_embd), dtype=jnp.float32)

    # 1) Module's actual init (zeroed c_proj) -> output must be zero.
    y = jax.block_until_ready(mlp_forward(x, w_fc_t, w_proj_t))
    assert y.shape == x.shape and y.dtype == x.dtype
    assert jnp.allclose(y, 0.0)

    # 2) Non-zero projection: kernel (bf16 compute) vs matched-precision reference.
    w_proj_chk = jax.random.normal(kchk, (hidden, n_embd), dtype=jnp.float32) * 0.02
    y2 = jax.block_until_ready(mlp_forward(x, w_fc_t, w_proj_chk))
    y2_ref_bf16 = _reference(x, w_fc_t, w_proj_chk, compute_dtype=jnp.bfloat16)
    assert jnp.allclose(y2, y2_ref_bf16, atol=2e-3, rtol=2e-3)
    # Loose check against the full-f32 module semantics.
    y2_ref_f32 = _reference(x, w_fc_t, w_proj_chk, compute_dtype=jnp.float32)
    assert jnp.allclose(y2, y2_ref_f32, atol=3e-2, rtol=3e-2)

    # 3) Multi-tile M grid with ragged token count (M=640, block_m=256 -> pad),
    #    f32 compute path.
    xb = jax.random.normal(kx, (4, 160, n_embd), dtype=jnp.float32)
    yb = jax.block_until_ready(
        mlp_forward(xb, w_fc_t, w_proj_chk, block_m=256,
                    compute_dtype=jnp.float32))
    yb_ref = _reference(xb, w_fc_t, w_proj_chk, compute_dtype=jnp.float32)
    assert jnp.allclose(yb, yb_ref, atol=2e-3, rtol=2e-3)

    print("KERNEL_OK")
</pallas_src>

<mosaic_0001>
module attributes {stable_mosaic.version = 11 : i64} {
  func.func @_mlp_kernel(%arg0: i32, %arg1: i32, %arg2: memref<16x128xbf16, #tpu.memory_space<vmem>>, %arg3: memref<128x128xbf16, #tpu.memory_space<vmem>>, %arg4: memref<128x128xbf16, #tpu.memory_space<vmem>>, %arg5: memref<16x128xf32, #tpu.memory_space<vmem>>, %arg6: memref<16x128xf32, #tpu.memory_space<vmem>>) attributes {dimension_semantics = [#tpu.dimension_semantics<parallel>, #tpu.dimension_semantics<arbitrary>], iteration_bounds = array<i64: 1, 1>, scalar_prefetch = 0 : i64, scratch_operands = 1 : i64, tpu.core_type = #tpu.core_type<tc>, window_params = [{transform_indices = @transform_0, window_bounds = array<i64: 16, 128>}, {transform_indices = @transform_1, window_bounds = array<i64: 128, 128>}, {transform_indices = @transform_2, window_bounds = array<i64: 128, 128>}, {transform_indices = @transform_3, window_bounds = array<i64: 16, 128>}]} {
    %c0_i32 = arith.constant 0 : i32
    %0 = arith.cmpi eq, %arg1, %c0_i32 : i32
    %1 = arith.extui %0 : i1 to i32
    %c0_i32_0 = arith.constant 0 : i32
    %2 = arith.cmpi ne, %1, %c0_i32_0 : i32
    scf.if %2 {
      %cst_14 = arith.constant 0.000000e+00 : f32
      %18 = vector.broadcast %cst_14 : f32 to vector<16x128xf32>
      %c0_15 = arith.constant 0 : index
      %c0_16 = arith.constant 0 : index
      %19 = vector.load %arg6[%c0_15, %c0_16] : memref<16x128xf32, #tpu.memory_space<vmem>>, vector<16x128xf32>
      tpu.vector_store %arg6[%c0_15, %c0_16], %18 {strides = array<i32>} : memref<16x128xf32, #tpu.memory_space<vmem>>, vector<16x128xf32>,
    } else {
    }
    %c0 = arith.constant 0 : index
    %c0_1 = arith.constant 0 : index
    %3 = vector.load %arg2[%c0, %c0_1] : memref<16x128xbf16, #tpu.memory_space<vmem>>, vector<16x128xbf16>
    %c0_2 = arith.constant 0 : index
    %c0_3 = arith.constant 0 : index
    %4 = vector.load %arg3[%c0_2, %c0_3] : memref<128x128xbf16, #tpu.memory_space<vmem>>, vector<128x128xbf16>
    %cst = arith.constant dense<0.000000e+00> : vector<16x128xf32>
    %5 = tpu.matmul %3, %4, %cst {dimension_numbers = #tpu.dot_dimension_numbers<[1], [0], [0], [1], [0, 0, 1, 1], [], []>} : vector<16x128xbf16>, vector<128x128xbf16>, vector<16x128xf32> -> vector<16x128xf32>
    %cst_4 = arith.constant 0.000000e+00 : f32
    %6 = vector.broadcast %cst_4 : f32 to vector<16x128xf32>
    %7 = arith.maximumf %5, %6 : vector<16x128xf32>
    %8 = arith.mulf %7, %7 : vector<16x128xf32>
    %c0_5 = arith.constant 0 : index
    %c0_6 = arith.constant 0 : index
    %9 = vector.load %arg6[%c0_5, %c0_6] : memref<16x128xf32, #tpu.memory_space<vmem>>, vector<16x128xf32>
    %10 = arith.truncf %8 : vector<16x128xf32> to vector<16x128xbf16>
    %c0_7 = arith.constant 0 : index
    %c0_8 = arith.constant 0 : index
    %11 = vector.load %arg4[%c0_7, %c0_8] : memref<128x128xbf16, #tpu.memory_space<vmem>>, vector<128x128xbf16>
    %cst_9 = arith.constant dense<0.000000e+00> : vector<16x128xf32>
    %12 = tpu.matmul %10, %11, %cst_9 {dimension_numbers = #tpu.dot_dimension_numbers<[1], [0], [0], [1], [0, 0, 1, 1], [], []>} : vector<16x128xbf16>, vector<128x128xbf16>, vector<16x128xf32> -> vector<16x128xf32>
    %13 = arith.addf %9, %12 : vector<16x128xf32>
    %c0_10 = arith.constant 0 : index
    %c0_11 = arith.constant 0 : index
    %14 = vector.load %arg6[%c0_10, %c0_11] : memref<16x128xf32, #tpu.memory_space<vmem>>, vector<16x128xf32>
    tpu.vector_store %arg6[%c0_10, %c0_11], %13 {strides = array<i32>} : memref<16x128xf32, #tpu.memory_space<vmem>>, vector<16x128xf32>,
    %c0_i32_12 = arith.constant 0 : i32
    %15 = arith.cmpi eq, %arg1, %c0_i32_12 : i32
    %16 = arith.extui %15 : i1 to i32
    %c0_i32_13 = arith.constant 0 : i32
    %17 = arith.cmpi ne, %16, %c0_i32_13 : i32
    scf.if %17 {
      %c0_14 = arith.constant 0 : index
      %c0_15 = arith.constant 0 : index
      %18 = vector.load %arg6[%c0_14, %c0_15] : memref<16x128xf32, #tpu.memory_space<vmem>>, vector<16x128xf32>
      %c0_16 = arith.constant 0 : index
      %c0_17 = arith.constant 0 : index
      %19 = vector.load %arg5[%c0_16, %c0_17] : memref<16x128xf32, #tpu.memory_space<vmem>>, vector<16x128xf32>
      tpu.vector_store %arg5[%c0_16, %c0_17], %18 {strides = array<i32>} : memref<16x128xf32, #tpu.memory_space<vmem>>, vector<16x128xf32>,
    } else {
    }
    return
  }
  func.func @transform_0(%arg0: i32, %arg1: i32) -> (i32, i32) {
    %c0_i32 = arith.constant 0 : i32
    %c0_i32_0 = arith.constant 0 : i32
    return %arg0, %c0_i32 : i32, i32
  }
  func.func @transform_1(%arg0: i32, %arg1: i32) -> (i32, i32) {
    %c0_i32 = arith.constant 0 : i32
    %c0_i32_0 = arith.constant 0 : i32
    return %c0_i32, %arg1 : i32, i32
  }
  func.func @transform_2(%arg0: i32, %arg1: i32) -> (i32, i32) {
    %c0_i32 = arith.constant 0 : i32
    %c0_i32_0 = arith.constant 0 : i32
    return %arg1, %c0_i32 : i32, i32
  }
  func.func @transform_3(%arg0: i32, %arg1: i32) -> (i32, i32) {
    %c0_i32 = arith.constant 0 : i32
    %c0_i32_0 = arith.constant 0 : i32
    return %arg0, %c0_i32 : i32, i32
  }
}

</mosaic_0001>

<llo_original>
// kernel: mlp_forward.1
$region0: #{mlp_forward.1}
  #allocation0 [shape = 'u32[]', space=smem, size = 0x4, offset = 0x4, fixed_abs, tag = 'smem constant byte address 0x4 - core index']
  #allocation1 [shape = 'u32[144,128]{1,0:T(1,128)}', space=vmem, size = 0x12000, scoped, tag = 'internal scratch']
  #allocation2 [shape = 'f32[16,128]{1,0:T(8,128)}', space=vmem, size = 0x2000, scoped, tag = 'scratch operand']
  %s0 = inlined_call_operand.vmem [shape: bf16[16,128], index: 0, kind: input, shape index: {}]
  %s1 = inlined_call_operand.vmem [shape: bf16[128,128], index: 1, kind: input, shape index: {}]
  %s2 = inlined_call_operand.vmem [shape: bf16[128,128], index: 2, kind: input, shape index: {}]
  %s3 = inlined_call_operand.vmem [shape: f32[16,128], index: 3, kind: output, shape index: {}]
  %s4 = sld [smem:[#allocation0]]
  $region30: #{mlp_forward.1} parent=0
    _
  %s6 = ssub.s32 1, %s4
  %s7 = scalar_select 0, %s6, %s4
  // Predicated region
  $region2: #{mlp_forward.1} parent=0 // pred_check
    _
  $region3: #{mlp_forward.1} parent=0 // pred_check_branch
    %9 = sbr.rel (0) target = $region5
  $region4: #{mlp_forward.1} parent=0 // pred_region
    _
  $region5: #{mlp_forward.1} parent=0 // pred_fallthru
    _
  // Predicated region
  $region6: #{mlp_forward.1} parent=0 // pred_check
    _
  $region7: #{mlp_forward.1} parent=0 // pred_check_branch
    %11 = sbr.rel (0) target = $region9
  $region8: #{mlp_forward.1} parent=0 // pred_region
    _
  $region9: #{mlp_forward.1} parent=0 // pred_fallthru
    _
  // Predicated region
  $region10: #{mlp_forward.1} parent=0 // pred_check
    _
  $region11: #{mlp_forward.1} parent=0 // pred_check_branch
    %13 = sbr.rel (0) target = $region13
  $region12: #{mlp_forward.1} parent=0 // pred_region
    _
  $region13: #{mlp_forward.1} parent=0 // pred_fallthru
    _
  %p15 = scmp.eq.s32.totalorder 0, 0
  // Predicated region
  $region14: #{mlp_forward.1} parent=0 // pred_check
    %p16 = pneg %p15
  $region15: #{mlp_forward.1} parent=0 // pred_check_branch
    %18 = sbr.rel (%p16) target = $region17
  $region16: #{mlp_forward.1} parent=0 // pred_region
    %19 = vst [vmem:[#allocation2] sm:$0xff] 0.0
    %20 = vst [vmem:[#allocation2 + $0x8] sm:$0xff] 0.0
  $region17: #{mlp_forward.1} parent=0 // pred_fallthru
    _
  %v21 = vld [vmem:[%s0] sm:$0xf]
  %v22 = vld [vmem:[%s0 + $0x4] sm:$0xf]
  %v23 = vld [vmem:[%s1] sm:$0xf]
  %v24 = vld [vmem:[%s1 + $0x4] sm:$0xf]
  %v25 = vld [vmem:[%s1 + $0x8] sm:$0xf]
  %v26 = vld [vmem:[%s1 + $0xc] sm:$0xf]
  %v27 = vld [vmem:[%s1 + $0x10] sm:$0xf]
  %v28 = vld [vmem:[%s1 + $0x14] sm:$0xf]
  %v29 = vld [vmem:[%s1 + $0x18] sm:$0xf]
  %v30 = vld [vmem:[%s1 + $0x1c] sm:$0xf]
  %v31 = vld [vmem:[%s1 + $0x20] sm:$0xf]
  %v32 = vld [vmem:[%s1 + $0x24] sm:$0xf]
  %v33 = vld [vmem:[%s1 + $0x28] sm:$0xf]
  %v34 = vld [vmem:[%s1 + $0x2c] sm:$0xf]
  %v35 = vld [vmem:[%s1 + $0x30] sm:$0xf]
  %v36 = vld [vmem:[%s1 + $0x34] sm:$0xf]
  %v37 = vld [vmem:[%s1 + $0x38] sm:$0xf]
  %v38 = vld [vmem:[%s1 + $0x3c] sm:$0xf]
  %v41 = vunpack.c.l.b16 %v21
  %v42 = vunpack.c.l.b16 %v22
  %v43 = vpack.c.b16 %v42, %v41
  %v61 = vunpack.c.l.b16 %v23
  %v62 = vunpack.c.l.b16 %v24
  %v63 = vunpack.c.l.b16 %v25
  %v64 = vunpack.c.l.b16 %v26
  %v65 = vunpack.c.l.b16 %v27
  %v66 = vunpack.c.l.b16 %v28
  %v67 = vunpack.c.l.b16 %v29
  %v68 = vunpack.c.l.b16 %v30
  %v69 = vunpack.c.l.b16 %v31
  %v70 = vunpack.c.l.b16 %v32
  %v71 = vunpack.c.l.b16 %v33
  %v72 = vunpack.c.l.b16 %v34
  %v73 = vunpack.c.l.b16 %v35
  %v74 = vunpack.c.l.b16 %v36
  %v75 = vunpack.c.l.b16 %v37
  %v76 = vunpack.c.l.b16 %v38
  %v77 = vpack.c.b16 %v62, %v61
  %v78 = vpack.c.b16 %v64, %v63
  %v79 = vpack.c.b16 %v66, %v65
  %v80 = vpack.c.b16 %v68, %v67
  %v81 = vpack.c.b16 %v70, %v69
  %v82 = vpack.c.b16 %v72, %v71
  %v83 = vpack.c.b16 %v74, %v73
  %v84 = vpack.c.b16 %v76, %v75
  %93 = vmatprep.subr.bf16.mxu0 0
  %94 = vmatpush1.bf16.msra.mxu0 %v77
  %95 = vmatprep.subr.bf16.mxu0 0
  %96 = vmatpush1.bf16.msra.mxu0 %v78
  %97 = vmatprep.subr.bf16.mxu0 0
  %98 = vmatpush1.bf16.msra.mxu0 %v79
  %99 = vmatprep.subr.bf16.mxu0 0
  %100 = vmatpush1.bf16.msra.mxu0 %v80
  %101 = vmatprep.subr.bf16.mxu0 0
  %102 = vmatpush1.bf16.msra.mxu0 %v81
  %103 = vmatprep.subr.bf16.mxu0 0
  %104 = vmatpush1.bf16.msra.mxu0 %v82
  %105 = vmatprep.subr.bf16.mxu0 0
  %106 = vmatpush1.bf16.msra.mxu0 %v83
  %107 = vmatprep.subr.bf16.mxu0 0
  %108 = vmatpush1.bf16.msra.mxu0 %v84
  %109 = vmatprep.subr.bf16.mxu0 0
  %110 = vmatpush1.bf16.msra.mxu0 0
  %111 = vmatprep.subr.bf16.mxu0 0
  %112 = vmatpush1.bf16.msra.mxu0 0
  %113 = vmatprep.subr.bf16.mxu0 0
  %114 = vmatpush1.bf16.msra.mxu0 0
  %115 = vmatprep.subr.bf16.mxu0 0
  %116 = vmatpush1.bf16.msra.mxu0 0
  %117 = vmatprep.subr.bf16.mxu0 0
  %118 = vmatpush1.bf16.msra.mxu0 0
  %119 = vmatprep.subr.bf16.mxu0 0
  %120 = vmatpush1.bf16.msra.mxu0 0
  %121 = vmatprep.subr.bf16.mxu0 0
  %122 = vmatpush1.bf16.msra.mxu0 0
  %123 = vmatprep.subr.bf16.mxu0 0
  %124 = vmatpush1.bf16.msra.mxu0 0
  %125 = vmatprep.mubr.bf16.mxu0 0
  %126 = vmatmul.mubr.bf16.gmra.mrb[0].mxu0 %v43
  %v127 = vpop.f32.mrb[0].mxu0
  %v128 = vadd.f32 0.0, %v127
  %v129 = vpop.f32.mrb[0].mxu0
  %v130 = vpop.f32.mrb[0].mxu0
  %v131 = vadd.f32 0.0, %v130
  %v132 = vpop.f32.mrb[0].mxu0
  %133 = vdwg.mxu0
  %v134 = vmax.f32 %v128, 0.0
  %v135 = vmax.f32 %v131, 0.0
  %v136 = vmul.f32 %v134, %v134
  %v137 = vmul.f32 %v135, %v135
  %v138 = vld [vmem:[#allocation2] sm:$0xff]
  %v139 = vld [vmem:[#allocation2 + $0x8] sm:$0xff]
  %v140 = vpack.c.bf16 %v137, %v136
  %v141 = vld [vmem:[%s2] sm:$0xf]
  %v142 = vld [vmem:[%s2 + $0x4] sm:$0xf]
  %v143 = vld [vmem:[%s2 + $0x8] sm:$0xf]
  %v144 = vld [vmem:[%s2 + $0xc] sm:$0xf]
  %v145 = vld [vmem:[%s2 + $0x10] sm:$0xf]
  %v146 = vld [vmem:[%s2 + $0x14] sm:$0xf]
  %v147 = vld [vmem:[%s2 + $0x18] sm:$0xf]
  %v148 = vld [vmem:[%s2 + $0x1c] sm:$0xf]
  %v149 = vld [vmem:[%s2 + $0x20] sm:$0xf]
  %v150 = vld [vmem:[%s2 + $0x24] sm:$0xf]
  %v151 = vld [vmem:[%s2 + $0x28] sm:$0xf]
  %v152 = vld [vmem:[%s2 + $0x2c] sm:$0xf]
  %v153 = vld [vmem:[%s2 + $0x30] sm:$0xf]
  %v154 = vld [vmem:[%s2 + $0x34] sm:$0xf]
  %v155 = vld [vmem:[%s2 + $0x38] sm:$0xf]
  %v156 = vld [vmem:[%s2 + $0x3c] sm:$0xf]
  %v173 = vunpack.c.l.b16 %v141
  %v174 = vunpack.c.l.b16 %v142
  %v175 = vunpack.c.l.b16 %v143
  %v176 = vunpack.c.l.b16 %v144
  %v177 = vunpack.c.l.b16 %v145
  %v178 = vunpack.c.l.b16 %v146
  %v179 = vunpack.c.l.b16 %v147
  %v180 = vunpack.c.l.b16 %v148
  %v181 = vunpack.c.l.b16 %v149
  %v182 = vunpack.c.l.b16 %v150
  %v183 = vunpack.c.l.b16 %v151
  %v184 = vunpack.c.l.b16 %v152
  %v185 = vunpack.c.l.b16 %v153
  %v186 = vunpack.c.l.b16 %v154
  %v187 = vunpack.c.l.b16 %v155
  %v188 = vunpack.c.l.b16 %v156
  %v189 = vpack.c.b16 %v174, %v173
  %v190 = vpack.c.b16 %v176, %v175
  %v191 = vpack.c.b16 %v178, %v177
  %v192 = vpack.c.b16 %v180, %v179
  %v193 = vpack.c.b16 %v182, %v181
  %v194 = vpack.c.b16 %v184, %v183
  %v195 = vpack.c.b16 %v186, %v185
  %v196 = vpack.c.b16 %v188, %v187
  %205 = vmatprep.subr.bf16.mxu0 0
  %206 = vmatpush1.bf16.msra.mxu0 %v189
  %207 = vmatprep.subr.bf16.mxu0 0
  %208 = vmatpush1.bf16.msra.mxu0 %v190
  %209 = vmatprep.subr.bf16.mxu0 0
  %210 = vmatpush1.bf16.msra.mxu0 %v191
  %211 = vmatprep.subr.bf16.mxu0 0
  %212 = vmatpush1.bf16.msra.mxu0 %v192
  %213 = vmatprep.subr.bf16.mxu0 0
  %214 = vmatpush1.bf16.msra.mxu0 %v193
  %215 = vmatprep.subr.bf16.mxu0 0
  %216 = vmatpush1.bf16.msra.mxu0 %v194
  %217 = vmatprep.subr.bf16.mxu0 0
  %218 = vmatpush1.bf16.msra.mxu0 %v195
  %219 = vmatprep.subr.bf16.mxu0 0
  %220 = vmatpush1.bf16.msra.mxu0 %v196
  %221 = vmatprep.subr.bf16.mxu0 0
  %222 = vmatpush1.bf16.msra.mxu0 0
  %223 = vmatprep.subr.bf16.mxu0 0
  %224 = vmatpush1.bf16.msra.mxu0 0
  %225 = vmatprep.subr.bf16.mxu0 0
  %226 = vmatpush1.bf16.msra.mxu0 0
  %227 = vmatprep.subr.bf16.mxu0 0
  %228 = vmatpush1.bf16.msra.mxu0 0
  %229 = vmatprep.subr.bf16.mxu0 0
  %230 = vmatpush1.bf16.msra.mxu0 0
  %231 = vmatprep.subr.bf16.mxu0 0
  %232 = vmatpush1.bf16.msra.mxu0 0
  %233 = vmatprep.subr.bf16.mxu0 0
  %234 = vmatpush1.bf16.msra.mxu0 0
  %235 = vmatprep.subr.bf16.mxu0 0
  %236 = vmatpush1.bf16.msra.mxu0 0
  %237 = vmatprep.mubr.bf16.mxu0 0
  %238 = vmatmul.mubr.bf16.gmra.mrb[0].mxu0 %v140
  %v239 = vpop.f32.mrb[0].mxu0
  %v240 = vadd.f32 0.0, %v239
  %v241 = vpop.f32.mrb[0].mxu0
  %v242 = vpop.f32.mrb[0].mxu0
  %v243 = vadd.f32 0.0, %v242
  %v244 = vpop.f32.mrb[0].mxu0
  %245 = vdwg.mxu0
  %v246 = vadd.f32 %v138, %v240
  %v247 = vadd.f32 %v139, %v243
  %248 = vst [vmem:[#allocation2] sm:$0xff] %v246
  %249 = vst [vmem:[#allocation2 + $0x8] sm:$0xff] %v247
  // Predicated region
  $region18: #{mlp_forward.1} parent=0 // pred_check
    %p250 = pneg %p15
  $region19: #{mlp_forward.1} parent=0 // pred_check_branch
    %252 = sbr.rel (%p250) target = $region21
  $region20: #{mlp_forward.1} parent=0 // pred_region
    %v253 = vld [vmem:[#allocation2] sm:$0xff]
    %v254 = vld [vmem:[#allocation2 + $0x8] sm:$0xff]
    %255 = vst [vmem:[%s3] sm:$0xff] %v253
    %256 = vst [vmem:[%s3 + $0x8] sm:$0xff] %v254
  $region21: #{mlp_forward.1} parent=0 // pred_fallthru
    _
  // Predicated region
  $region22: #{mlp_forward.1} parent=0 // pred_check
    _
  $region23: #{mlp_forward.1} parent=0 // pred_check_branch
    %258 = sbr.rel (0) target = $region25
  $region24: #{mlp_forward.1} parent=0 // pred_region
    _
  $region25: #{mlp_forward.1} parent=0 // pred_fallthru
    _
  // Predicated region
  $region26: #{mlp_forward.1} parent=0 // pred_check
    _
  $region27: #{mlp_forward.1} parent=0 // pred_check_branch
    %260 = sbr.rel (0) target = $region29
  $region28: #{mlp_forward.1} parent=0 // pred_region
    _
  $region29: #{mlp_forward.1} parent=0 // pred_fallthru
    _

</llo_original>
